<compile_context>
chip_gen: v7x
topology: tpu7x:2x2x1
jax: 0.10.0
libtpu: 0.0.40
codegen_flags: <defaults>
</compile_context>

<pallas_src>
import jax
import jax.numpy as jnp
from jax import lax
from jax.experimental import pallas as pl
from jax.experimental.pallas import tpu as pltpu


def _cdiv(a: int, b: int) -> int:
    return -(-a // b)


def _round_up(v: int, m: int) -> int:
    return _cdiv(v, m) * m


def _make_encoder_kernel(T: int, TT: int, LW: int, NC: int, nt: int):
    """Build the (batch-tile, time-tile) kernel for static shapes.

    x_ref  : (TB, F, TT)  input block, original NCW layout (time on lanes)
    w_ref  : (F, E_pad)   projection weight with the 1/T mean-scale folded in
    b_ref  : (1, E_pad)   bias
    o_ref  : (TB, E_pad)  output embeddings block (lane-dense)
    acc_ref: (TB, F, LW)  f32 lane-partial accumulator (VMEM scratch)
    """
    needs_mask = nt * TT > T  # static: last time tile overhangs T

    def kernel(x_ref, w_ref, b_ref, o_ref, acc_ref):
        t = pl.program_id(1)

        @pl.when(t == 0)
        def _init():
            acc_ref[...] = jnp.zeros_like(acc_ref)

        def accumulate(masked: bool):
            # Static 128-lane sub-chunks of the time tile -> pure VPU adds into
            # the lane-partial accumulator.  No per-step cross-lane reduce.
            last_base = (nt - 1) * TT  # masked path is only ever the last tile
            for c in range(NC):
                lo = c * LW
                if masked and last_base + lo >= T:
                    continue  # chunk lies entirely past T: skip it
                chunk = x_ref[:, :, lo:lo + LW].astype(jnp.float32)
                if masked and last_base + lo + LW > T:
                    lane = lax.broadcasted_iota(jnp.int32, chunk.shape, 2)
                    chunk = jnp.where(lane < (T - (last_base + lo)), chunk, 0.0)
                acc_ref[...] += chunk

        if needs_mask:
            if nt == 1:
                accumulate(True)
            else:
                is_last = t == nt - 1

                @pl.when(is_last)
                def _masked():
                    accumulate(True)

                @pl.when(jnp.logical_not(is_last))
                def _fast():
                    accumulate(False)
        else:
            accumulate(False)

        @pl.when(t == nt - 1)
        def _finalize():
            # Single cross-lane (XLU) reduce, then the one-shot MXU projection.
            pooled = jnp.sum(acc_ref[...], axis=-1)                  # (TB, F)
            proj = jnp.dot(pooled, w_ref[...],
                           preferred_element_type=jnp.float32)       # (TB, E_pad)
            o_ref[...] = (proj + b_ref[...]).astype(o_ref.dtype)

    return kernel


def _choose_tiles(B, F, T, E_pad, itemsize, vmem_limit):
    """Pick (TB, TT) that fit the per-chip VMEM budget."""
    # --- batch tile ---------------------------------------------------------
    if B <= 8:
        TB = B  # full-dim batch block: always a legal (second-to-last) tile
    else:
        # >=2 batch blocks (v7x dual TensorCore on the "parallel" axis) and
        # sized to minimise over-padding of the last block.
        nb0 = max(2, _cdiv(B, 128))
        TB = _round_up(_cdiv(B, nb0), 8)

    # --- time tile (lane axis: multiple of 128, or the full dim) ------------
    if T <= 128:
        TT = T
    else:
        TT = min(2048, _round_up(T, 128))

    budget = int(vmem_limit * 0.85)  # headroom for compiler internals

    def usage(tb, tt, n_xbuf=2):
        lw = 128 if tt % 128 == 0 else tt
        return (n_xbuf * tb * F * tt * itemsize   # pipelined X buffers
                + tb * F * lw * 4                 # lane-partial accumulator
                + 2 * F * E_pad * 4               # resident weight (f32)
                + 2 * tb * E_pad * 4              # output block
                + 2 * E_pad * 4)                  # bias

    # Shrink the time tile first (multiples of 128), then the batch tile.
    while T > 128 and TT > 128 and usage(TB, TT) > budget:
        TT = max(128, ((TT // 2) // 128) * 128)
    while TB > 8 and usage(TB, TT) > budget:
        TB = max(8, _round_up(TB // 2, 8))
    # TODO(synk): if F alone is so large that TB=8/TT=128 still exceeds the
    # budget, an F-tiled (two-stage) variant would be needed.

    nb = _cdiv(B, TB)
    nt = _cdiv(T, TT)

    # Deeper X pipeline only for the small-tile / many-step regime, and only
    # when the extra buffer fits.
    n_xbuf = 2
    if nt >= 4 and TT <= 256 and usage(TB, TT, 3) <= budget:
        n_xbuf = 3

    return TB, TT, nb, nt, n_xbuf


def base_method_forward(x_ncw, weight, bias):
    """Forward pass of BaseMethod: return encoder(X).

    Args:
      x_ncw:  (B, F, T) -- PyTorch channel-first layout (never copied/padded).
      weight: (F, E)    -- encoder projection weight.
      bias:   (E,)      -- encoder projection bias.

    Returns:
      (B, E) float32 embeddings (temporal mean pooling + linear projection).
    """
    B, F, T = x_ncw.shape
    Fw, E = weight.shape
    assert Fw == F
    itemsize = jnp.dtype(x_ncw.dtype).itemsize

    E_pad = _round_up(E, 128)  # lane-dense output slab

    # Per-chip VMEM budget (v5e/v6e: 128 MiB -> 96 MiB limit; v7x: 64 -> 48).
    try:
        vmem_cap = int(pltpu.get_tpu_info().vmem_capacity_bytes)
    except Exception:
        vmem_cap = 64 << 20  # conservative (v7x per-TC VMEM)
    vmem_limit = (vmem_cap * 3) // 4

    TB, TT, nb, nt, n_xbuf = _choose_tiles(B, F, T, E_pad, itemsize, vmem_limit)
    LW = 128 if TT % 128 == 0 else TT
    NC = TT // LW
    B_out = nb * TB  # only the (tiny) output allocation is padded, never X

    # Small params: fold the exact 1/T mean scale into the weight (inner loop
    # becomes a pure sum-accumulate) and pad the E (lane) axis to 128.  Kept in
    # f32: it is tiny and resident, and keeps the finalize dot full precision.
    w_scaled = weight.astype(jnp.float32) / jnp.float32(T)
    b_row = bias.astype(jnp.float32).reshape(1, E)
    if E_pad != E:
        w_p = jnp.pad(w_scaled, ((0, 0), (0, E_pad - E)))
        b_p = jnp.pad(b_row, ((0, 0), (0, E_pad - E)))
    else:
        w_p, b_p = w_scaled, b_row

    if n_xbuf > 2:
        x_spec = pl.BlockSpec((TB, F, TT), lambda b, t: (b, 0, t),
                              pipeline_mode=pl.Buffered(n_xbuf))
    else:
        x_spec = pl.BlockSpec((TB, F, TT), lambda b, t: (b, 0, t))

    cost = pl.CostEstimate(
        flops=2 * B_out * F * E_pad + B * F * T,
        transcendentals=0,
        bytes_accessed=(B * F * T * itemsize      # X read exactly once
                        + F * E_pad * 4
                        + B_out * E_pad * 4),
    )

    kernel = _make_encoder_kernel(T=T, TT=TT, LW=LW, NC=NC, nt=nt)

    out_pad = pl.pallas_call(
        kernel,
        out_shape=jax.ShapeDtypeStruct((B_out, E_pad), jnp.float32),
        grid_spec=pltpu.PrefetchScalarGridSpec(
            num_scalar_prefetch=0,
            grid=(nb, nt),
            in_specs=[
                x_spec,                                             # X tile (NCW)
                pl.BlockSpec((F, E_pad), lambda b, t: (0, 0)),      # weight
                pl.BlockSpec((1, E_pad), lambda b, t: (0, 0)),      # bias
            ],
            out_specs=pl.BlockSpec((TB, E_pad), lambda b, t: (b, 0)),
            scratch_shapes=[pltpu.VMEM((TB, F, LW), jnp.float32)],
        ),
        compiler_params=pltpu.CompilerParams(
            dimension_semantics=("parallel", "arbitrary"),
            vmem_limit_bytes=vmem_limit),
        cost_estimate=cost,
    )(x_ncw, w_p, b_p)

    return out_pad[:B, :E]


# TODO(synk): train_step / update_optim / SSPS hooks / metric logging are
# training-loop plumbing with no forward-pass compute; only forward()
# (= encoder(X)) is implemented here.


if __name__ == "__main__":
    key = jax.random.PRNGKey(0)
    k_x, k_w, k_b = jax.random.split(key, 3)

    B, F, T = 2, 32, 16      # batch, feature dim, time frames
    E = 64                   # embeddings_dim

    x = jax.random.normal(k_x, (B, F, T), dtype=jnp.float32)
    weight = jax.random.normal(k_w, (F, E), dtype=jnp.float32) * 0.05
    bias = jax.random.normal(k_b, (E,), dtype=jnp.float32) * 0.01

    out = jax.block_until_ready(base_method_forward(x, weight, bias))

    # Pure-JAX reference: temporal mean pooling (over T) then linear projection.
    ref = jnp.mean(x, axis=-1) @ weight + bias
    assert out.shape == (B, E)
    assert jnp.allclose(out, ref, atol=1e-4, rtol=1e-4)

    print("KERNEL_OK")
</pallas_src>

<mosaic_0001>
module attributes {stable_mosaic.version = 11 : i64} {
  func.func @kernel(%arg0: i32, %arg1: i32, %arg2: memref<2x32x16xf32, #tpu.memory_space<vmem>>, %arg3: memref<32x128xf32, #tpu.memory_space<vmem>>, %arg4: memref<1x128xf32, #tpu.memory_space<vmem>>, %arg5: memref<2x128xf32, #tpu.memory_space<vmem>>, %arg6: memref<2x32x16xf32, #tpu.memory_space<vmem>>) attributes {dimension_semantics = [#tpu.dimension_semantics<parallel>, #tpu.dimension_semantics<arbitrary>], iteration_bounds = array<i64: 1, 1>, scalar_prefetch = 0 : i64, scratch_operands = 1 : i64, tpu.core_type = #tpu.core_type<tc>, window_params = [{transform_indices = @transform_0, window_bounds = array<i64: 2, 32, 16>}, {pipeline_mode = #tpu.pipeline_mode<synchronous>, transform_indices = @transform_1, window_bounds = array<i64: 32, 128>}, {pipeline_mode = #tpu.pipeline_mode<synchronous>, transform_indices = @transform_2, window_bounds = array<i64: 1, 128>}, {transform_indices = @transform_3, window_bounds = array<i64: 2, 128>}]} {
    %c0_i32 = arith.constant 0 : i32
    %0 = arith.cmpi eq, %arg1, %c0_i32 : i32
    %1 = arith.extui %0 : i1 to i32
    %c0_i32_0 = arith.constant 0 : i32
    %2 = arith.cmpi ne, %1, %c0_i32_0 : i32
    scf.if %2 {
      %cst = arith.constant 0.000000e+00 : f32
      %10 = vector.broadcast %cst : f32 to vector<2x32x16xf32>
      %c0_11 = arith.constant 0 : index
      %c0_12 = arith.constant 0 : index
      %c0_13 = arith.constant 0 : index
      %11 = vector.load %arg6[%c0_11, %c0_12, %c0_13] : memref<2x32x16xf32, #tpu.memory_space<vmem>>, vector<2x32x16xf32>
      tpu.vector_store %arg6[%c0_11, %c0_12, %c0_13], %10 {strides = array<i32>} : memref<2x32x16xf32, #tpu.memory_space<vmem>>, vector<2x32x16xf32>,
    } else {
    }
    %c0 = arith.constant 0 : index
    %c0_1 = arith.constant 0 : index
    %c0_2 = arith.constant 0 : index
    %3 = vector.load %arg2[%c0, %c0_1, %c0_2] : memref<2x32x16xf32, #tpu.memory_space<vmem>>, vector<2x32x16xf32>
    %c0_3 = arith.constant 0 : index
    %c0_4 = arith.constant 0 : index
    %c0_5 = arith.constant 0 : index
    %4 = vector.load %arg6[%c0_3, %c0_4, %c0_5] : memref<2x32x16xf32, #tpu.memory_space<vmem>>, vector<2x32x16xf32>
    %5 = arith.addf %4, %3 : vector<2x32x16xf32>
    %c0_6 = arith.constant 0 : index
    %c0_7 = arith.constant 0 : index
    %c0_8 = arith.constant 0 : index
    %6 = vector.load %arg6[%c0_6, %c0_7, %c0_8] : memref<2x32x16xf32, #tpu.memory_space<vmem>>, vector<2x32x16xf32>
    tpu.vector_store %arg6[%c0_6, %c0_7, %c0_8], %5 {strides = array<i32>} : memref<2x32x16xf32, #tpu.memory_space<vmem>>, vector<2x32x16xf32>,
    %c0_i32_9 = arith.constant 0 : i32
    %7 = arith.cmpi eq, %arg1, %c0_i32_9 : i32
    %8 = arith.extui %7 : i1 to i32
    %c0_i32_10 = arith.constant 0 : i32
    %9 = arith.cmpi ne, %8, %c0_i32_10 : i32
    scf.if %9 {
      %c0_11 = arith.constant 0 : index
      %c0_12 = arith.constant 0 : index
      %c0_13 = arith.constant 0 : index
      %10 = vector.load %arg6[%c0_11, %c0_12, %c0_13] : memref<2x32x16xf32, #tpu.memory_space<vmem>>, vector<2x32x16xf32>
      %cst = arith.constant dense<0.000000e+00> : vector<2x32xf32>
      %11 = vector.multi_reduction <add>, %10, %cst [2] : vector<2x32x16xf32> to vector<2x32xf32>
      %c0_14 = arith.constant 0 : index
      %c0_15 = arith.constant 0 : index
      %12 = vector.load %arg3[%c0_14, %c0_15] : memref<32x128xf32, #tpu.memory_space<vmem>>, vector<32x128xf32>
      %cst_16 = arith.constant dense<0.000000e+00> : vector<2x128xf32>
      %13 = tpu.matmul %11, %12, %cst_16 {dimension_numbers = #tpu.dot_dimension_numbers<[1], [0], [0], [1], [0, 0, 1, 1], [], []>} : vector<2x32xf32>, vector<32x128xf32>, vector<2x128xf32> -> vector<2x128xf32>
      %c0_17 = arith.constant 0 : index
      %c0_18 = arith.constant 0 : index
      %14 = vector.load %arg4[%c0_17, %c0_18] : memref<1x128xf32, #tpu.memory_space<vmem>>, vector<1x128xf32>
      %15 = vector.broadcast %14 : vector<1x128xf32> to vector<2x128xf32>
      %16 = arith.addf %13, %15 : vector<2x128xf32>
      %c0_19 = arith.constant 0 : index
      %c0_20 = arith.constant 0 : index
      %17 = vector.load %arg5[%c0_19, %c0_20] : memref<2x128xf32, #tpu.memory_space<vmem>>, vector<2x128xf32>
      tpu.vector_store %arg5[%c0_19, %c0_20], %16 {strides = array<i32>} : memref<2x128xf32, #tpu.memory_space<vmem>>, vector<2x128xf32>,
    } else {
    }
    return
  }
  func.func @transform_0(%arg0: i32, %arg1: i32) -> (i32, i32, i32) {
    %c0_i32 = arith.constant 0 : i32
    %c0_i32_0 = arith.constant 0 : i32
    return %arg0, %c0_i32, %arg1 : i32, i32, i32
  }
  func.func @transform_1(%arg0: i32, %arg1: i32) -> (i32, i32) {
    %c0_i32 = arith.constant 0 : i32
    %c0_i32_0 = arith.constant 0 : i32
    %c0_i32_1 = arith.constant 0 : i32
    return %c0_i32, %c0_i32_0 : i32, i32
  }
  func.func @transform_2(%arg0: i32, %arg1: i32) -> (i32, i32) {
    %c0_i32 = arith.constant 0 : i32
    %c0_i32_0 = arith.constant 0 : i32
    %c0_i32_1 = arith.constant 0 : i32
    return %c0_i32, %c0_i32_0 : i32, i32
  }
  func.func @transform_3(%arg0: i32, %arg1: i32) -> (i32, i32) {
    %c0_i32 = arith.constant 0 : i32
    %c0_i32_0 = arith.constant 0 : i32
    return %arg0, %c0_i32 : i32, i32
  }
}

</mosaic_0001>

<llo_original>
// kernel: tpu_custom_call.1
$region0: #{tpu_custom_call.1}
  #allocation0 [shape = 'u32[]', space=smem, size = 0x4, offset = 0x4, fixed_abs, tag = 'smem constant byte address 0x4 - core index']
  #allocation1 [shape = 'u32[144,128]{1,0:T(1,128)}', space=vmem, size = 0x12000, scoped, tag = 'internal scratch']
  #allocation2 [shape = 'f32[2,32,16]{2,1,0:T(8,128)}', space=vmem, size = 0x8000, scoped, tag = 'scratch operand']
  %s0 = inlined_call_operand.vmem [shape: f32[2,32,16], index: 0, kind: input, shape index: {}]
  %s1 = inlined_call_operand.vmem [shape: f32[32,128], index: 1, kind: input, shape index: {}]
  %s2 = inlined_call_operand.vmem [shape: f32[1,128], index: 2, kind: input, shape index: {}]
  %s3 = inlined_call_operand.hbm [shape: f32[2,128], index: 3, kind: output, shape index: {}]
  %s4 = sld [smem:[#allocation0]]
  $region30: #{tpu_custom_call.1} parent=0
    _
  %s6 = ssub.s32 1, %s4
  %s7 = scalar_select 0, %s6, %s4
  $region1: #{tpu_custom_call.1} parent=0
    #allocation3 [shape = 'u8[1024]{0}', space=vmem, size = 0x400, scoped, tag = 'output window, operand 0, single buffered']
    #allocation4 [shape = 's32[1]{0}', space=sflag, size = 0x4, scoped, tag = 'scoped memory for tpu_custom_call.1']
    %8 = vsyncpa [#allocation4], 0
    // Predicated region
    $region2: #{tpu_custom_call.1} parent=1 // pred_check
      _
    $region3: #{tpu_custom_call.1} parent=1 // pred_check_branch
      %10 = sbr.rel (0) target = $region5
    $region4: #{tpu_custom_call.1} parent=1 // pred_region
      _
    $region5: #{tpu_custom_call.1} parent=1 // pred_fallthru
      _
    // Predicated region
    $region6: #{tpu_custom_call.1} parent=1 // pred_check
      _
    $region7: #{tpu_custom_call.1} parent=1 // pred_check_branch
      %12 = sbr.rel (0) target = $region9
    $region8: #{tpu_custom_call.1} parent=1 // pred_region
      _
    $region9: #{tpu_custom_call.1} parent=1 // pred_fallthru
      _
    // Predicated region
    $region10: #{tpu_custom_call.1} parent=1 // pred_check
      _
    $region11: #{tpu_custom_call.1} parent=1 // pred_check_branch
      %14 = sbr.rel (0) target = $region13
    $region12: #{tpu_custom_call.1} parent=1 // pred_region
      _
    $region13: #{tpu_custom_call.1} parent=1 // pred_fallthru
      _
    %p15 = scmp.eq.s32.totalorder 0, 0
    // Predicated region
    $region14: #{tpu_custom_call.1} parent=1 // pred_check
      %p16 = pneg %p15
    $region15: #{tpu_custom_call.1} parent=1 // pred_check_branch
      %18 = sbr.rel (%p16) target = $region17
    $region16: #{tpu_custom_call.1} parent=1 // pred_region
      %vm19 = vcmask 130048
      %20 = vst.msk [vmem:[#allocation2] sm:$0xff] %vm19, 0.0
      %21 = vst.msk [vmem:[#allocation2 + $0x8] sm:$0xff] %vm19, 0.0
      %22 = vst.msk [vmem:[#allocation2 + $0x10] sm:$0xff] %vm19, 0.0
      %23 = vst.msk [vmem:[#allocation2 + $0x18] sm:$0xff] %vm19, 0.0
      %24 = vst.msk [vmem:[#allocation2 + $0x20] sm:$0xff] %vm19, 0.0
      %25 = vst.msk [vmem:[#allocation2 + $0x28] sm:$0xff] %vm19, 0.0
      %26 = vst.msk [vmem:[#allocation2 + $0x30] sm:$0xff] %vm19, 0.0
      %27 = vst.msk [vmem:[#allocation2 + $0x38] sm:$0xff] %vm19, 0.0
    $region17: #{tpu_custom_call.1} parent=1 // pred_fallthru
      _
    %v28 = vld [vmem:[%s0] sm:$0xff]
    %v29 = vld [vmem:[%s0 + $0x8] sm:$0xff]
    %v30 = vld [vmem:[%s0 + $0x10] sm:$0xff]
    %v31 = vld [vmem:[%s0 + $0x18] sm:$0xff]
    %v32 = vld [vmem:[%s0 + $0x20] sm:$0xff]
    %v33 = vld [vmem:[%s0 + $0x28] sm:$0xff]
    %v34 = vld [vmem:[%s0 + $0x30] sm:$0xff]
    %v35 = vld [vmem:[%s0 + $0x38] sm:$0xff]
    %v36 = vld [vmem:[#allocation2] sm:$0xff]
    %v37 = vld [vmem:[#allocation2 + $0x8] sm:$0xff]
    %v38 = vld [vmem:[#allocation2 + $0x10] sm:$0xff]
    %v39 = vld [vmem:[#allocation2 + $0x18] sm:$0xff]
    %v40 = vld [vmem:[#allocation2 + $0x20] sm:$0xff]
    %v41 = vld [vmem:[#allocation2 + $0x28] sm:$0xff]
    %v42 = vld [vmem:[#allocation2 + $0x30] sm:$0xff]
    %v43 = vld [vmem:[#allocation2 + $0x38] sm:$0xff]
    %v44 = vadd.f32 %v36, %v28
    %v45 = vadd.f32 %v37, %v29
    %v46 = vadd.f32 %v38, %v30
    %v47 = vadd.f32 %v39, %v31
    %v48 = vadd.f32 %v40, %v32
    %v49 = vadd.f32 %v41, %v33
    %v50 = vadd.f32 %v42, %v34
    %v51 = vadd.f32 %v43, %v35
    %vm52 = vcmask 130048
    %53 = vst.msk [vmem:[#allocation2] sm:$0xff] %vm52, %v44
    %54 = vst.msk [vmem:[#allocation2 + $0x8] sm:$0xff] %vm52, %v45
    %55 = vst.msk [vmem:[#allocation2 + $0x10] sm:$0xff] %vm52, %v46
    %56 = vst.msk [vmem:[#allocation2 + $0x18] sm:$0xff] %vm52, %v47
    %57 = vst.msk [vmem:[#allocation2 + $0x20] sm:$0xff] %vm52, %v48
    %58 = vst.msk [vmem:[#allocation2 + $0x28] sm:$0xff] %vm52, %v49
    %59 = vst.msk [vmem:[#allocation2 + $0x30] sm:$0xff] %vm52, %v50
    %60 = vst.msk [vmem:[#allocation2 + $0x38] sm:$0xff] %vm52, %v51
    // Predicated region
    $region18: #{tpu_custom_call.1} parent=1 // pred_check
      %p61 = pneg %p15
    $region19: #{tpu_custom_call.1} parent=1 // pred_check_branch
      %63 = sbr.rel (%p61) target = $region21
    $region20: #{tpu_custom_call.1} parent=1 // pred_region
      %v64 = vld [vmem:[#allocation2] sm:$0xff]
      %v65 = vld [vmem:[#allocation2 + $0x8] sm:$0xff]
      %v66 = vld [vmem:[#allocation2 + $0x10] sm:$0xff]
      %v67 = vld [vmem:[#allocation2 + $0x18] sm:$0xff]
      %v68 = vld [vmem:[#allocation2 + $0x20] sm:$0xff]
      %v69 = vld [vmem:[#allocation2 + $0x28] sm:$0xff]
      %v70 = vld [vmem:[#allocation2 + $0x30] sm:$0xff]
      %v71 = vld [vmem:[#allocation2 + $0x38] sm:$0xff]
      %v72 = vsel %vm52, %v64, 0.0
      %73 = vadd.xlane.f32.xlu0 %v72
      %v74 = vpop.xlane.xlu0 %73
      %v75 = vsel %vm52, %v65, 0.0
      %76 = vadd.xlane.f32.xlu0 %v75
      %v77 = vpop.xlane.xlu0 %76
      %v78 = vsel %vm52, %v66, 0.0
      %79 = vadd.xlane.f32.xlu0 %v78
      %v80 = vpop.xlane.xlu0 %79
      %v81 = vsel %vm52, %v67, 0.0
      %82 = vadd.xlane.f32.xlu0 %v81
      %v83 = vpop.xlane.xlu0 %82
      %v84 = vsel %vm52, %v68, 0.0
      %85 = vadd.xlane.f32.xlu0 %v84
      %v86 = vpop.xlane.xlu0 %85
      %v87 = vsel %vm52, %v69, 0.0
      %88 = vadd.xlane.f32.xlu0 %v87
      %v89 = vpop.xlane.xlu0 %88
      %v90 = vsel %vm52, %v70, 0.0
      %91 = vadd.xlane.f32.xlu0 %v90
      %v92 = vpop.xlane.xlu0 %91
      %v93 = vsel %vm52, %v71, 0.0
      %94 = vadd.xlane.f32.xlu0 %v93
      %v95 = vpop.xlane.xlu0 %94
      %v96 = vld [vmem:[%s1] sm:$0xff]
      %v97 = vld [vmem:[%s1 + $0x8] sm:$0xff]
      %v98 = vld [vmem:[%s1 + $0x10] sm:$0xff]
      %v99 = vld [vmem:[%s1 + $0x18] sm:$0xff]
      %v100 = vld [vmem:[%s2] sm:$0x1]
      %v102 = vlaneseq
      %v103 = vshrl.u32 %v102, 7
      %v104 = vsub.s32 0, %v103
      %v105 = vrot.slane %v100, %v104
      %v115 = vlaneseq
      %v116 = vand.u32 %v115, 127
      %v117 = vlaneseq
      %v118 = vshrl.u32 %v117, 7
      %v119 = vsub.s32 %v116, %v118
      %v120 = vrot.slane %v74, %v119
      %v121 = vadd.s32 %v116, 4294967288
      %v122 = vlaneseq
      %v123 = vshrl.u32 %v122, 7
      %v124 = vsub.s32 %v121, %v123
      %v125 = vrot.slane %v77, %v124
      %vm126 = vcmask 130112
      %v127 = vsel %vm126, %v125, %v120
      %v128 = vadd.s32 %v116, 4294967280
      %v129 = vlaneseq
      %v130 = vshrl.u32 %v129, 7
      %v131 = vsub.s32 %v128, %v130
      %v132 = vrot.slane %v80, %v131
      %vm133 = vcmask 195712
      %v134 = vsel %vm133, %v132, %v127
      %v135 = vadd.s32 %v116, 4294967272
      %v136 = vlaneseq
      %v137 = vshrl.u32 %v136, 7
      %v138 = vsub.s32 %v135, %v137
      %v139 = vrot.slane %v83, %v138
      %vm140 = vcmask 261312
      %v141 = vsel %vm140, %v139, %v134
      %v142 = vlaneseq
      %v143 = vshrl.u32 %v142, 7
      %v144 = vsub.s32 %v116, %v143
      %v145 = vrot.slane %v86, %v144
      %v146 = vlaneseq
      %v147 = vshrl.u32 %v146, 7
      %v148 = vsub.s32 %v121, %v147
      %v149 = vrot.slane %v89, %v148
      %v150 = vsel %vm126, %v149, %v145
      %v151 = vlaneseq
      %v152 = vshrl.u32 %v151, 7
      %v153 = vsub.s32 %v128, %v152
      %v154 = vrot.slane %v92, %v153
      %v155 = vsel %vm133, %v154, %v150
      %v156 = vlaneseq
      %v157 = vshrl.u32 %v156, 7
      %v158 = vsub.s32 %v135, %v157
      %v159 = vrot.slane %v95, %v158
      %v160 = vsel %vm140, %v159, %v155
      %vm161 = vcmask 1041409
      %v162 = vsel %vm161, %v160, %v141
      %vm163 = vcmask 261120
      %v164 = vsel %vm163, %v162, 0
      %166 = vmatprep.subr.mxu0 0.0
      %167 = vmatpush1.msra.mxu0 %v96
      %168 = vmatprep.subr.mxu0 0.0
      %169 = vmatpush1.msra.mxu0 %v97
      %170 = vmatprep.subr.mxu0 0.0
      %171 = vmatpush1.msra.mxu0 %v98
      %172 = vmatprep.subr.mxu0 0.0
      %173 = vmatpush1.msra.mxu0 %v99
      %174 = vmatprep.subr.mxu0 0.0
      %175 = vmatpush1.msra.mxu0 0.0
      %176 = vmatprep.subr.mxu0 0.0
      %177 = vmatpush1.msra.mxu0 0.0
      %178 = vmatprep.subr.mxu0 0.0
      %179 = vmatpush1.msra.mxu0 0.0
      %180 = vmatprep.subr.mxu0 0.0
      %181 = vmatpush1.msra.mxu0 0.0
      %182 = vmatprep.subr.mxu0 0.0
      %183 = vmatpush1.msra.mxu0 0.0
      %184 = vmatprep.subr.mxu0 0.0
      %185 = vmatpush1.msra.mxu0 0.0
      %186 = vmatprep.subr.mxu0 0.0
      %187 = vmatpush1.msra.mxu0 0.0
      %188 = vmatprep.subr.mxu0 0.0
      %189 = vmatpush1.msra.mxu0 0.0
      %190 = vmatprep.subr.mxu0 0.0
      %191 = vmatpush1.msra.mxu0 0.0
      %192 = vmatprep.subr.mxu0 0.0
      %193 = vmatpush1.msra.mxu0 0.0
      %194 = vmatprep.subr.mxu0 0.0
      %195 = vmatpush1.msra.mxu0 0.0
      %196 = vmatprep.subr.mxu0 0.0
      %197 = vmatpush1.msra.mxu0 0.0
      %198 = vmatprep.subr.mxu0 0.0
      %199 = vmatpush1.msra.mxu0 0.0
      %200 = vmatprep.subr.mxu0 0.0
      %201 = vmatpush1.msra.mxu0 0.0
      %202 = vmatprep.subr.mxu0 0.0
      %203 = vmatpush1.msra.mxu0 0.0
      %204 = vmatprep.subr.mxu0 0.0
      %205 = vmatpush1.msra.mxu0 0.0
      %206 = vmatprep.subr.mxu0 0.0
      %207 = vmatpush1.msra.mxu0 0.0
      %208 = vmatprep.subr.mxu0 0.0
      %209 = vmatpush1.msra.mxu0 0.0
      %210 = vmatprep.subr.mxu0 0.0
      %211 = vmatpush1.msra.mxu0 0.0
      %212 = vmatprep.subr.mxu0 0.0
      %213 = vmatpush1.msra.mxu0 0.0
      %214 = vmatprep.subr.mxu0 0.0
      %215 = vmatpush1.msra.mxu0 0.0
      %216 = vmatprep.subr.mxu0 0.0
      %217 = vmatpush1.msra.mxu0 0.0
      %218 = vmatprep.subr.mxu0 0.0
      %219 = vmatpush1.msra.mxu0 0.0
      %220 = vmatprep.subr.mxu0 0.0
      %221 = vmatpush1.msra.mxu0 0.0
      %222 = vmatprep.subr.mxu0 0.0
      %223 = vmatpush1.msra.mxu0 0.0
      %224 = vmatprep.subr.mxu0 0.0
      %225 = vmatpush1.msra.mxu0 0.0
      %226 = vmatprep.subr.mxu0 0.0
      %227 = vmatpush1.msra.mxu0 0.0
      %228 = vmatprep.subr.mxu0 0.0
      %229 = vmatpush1.msra.mxu0 0.0
      %230 = vmatprep.mubr.f32.mxu0 0.0
      %231 = vmatmul.mubr.f32.gmra.mrb[0].mxu0 %v164
      %v232 = vpop.f32.mrb[0].mxu0
      %v233 = vadd.f32 %v105, %v232
      %v234 = vpop.f32.mrb[0].mxu0
      %235 = vdwg.mxu0
      %236 = vst [vmem:[#allocation3] sm:$0x3] %v233
    $region21: #{tpu_custom_call.1} parent=1 // pred_fallthru
      _
    // Predicated region
    $region22: #{tpu_custom_call.1} parent=1 // pred_check
      _
    $region23: #{tpu_custom_call.1} parent=1 // pred_check_branch
      %238 = sbr.rel (0) target = $region25
    $region24: #{tpu_custom_call.1} parent=1 // pred_region
      %s240 = ssub.s32 32, 32
      %241 = vsyncadd [#allocation4], %s240
      %s243 = sshll.u32 [#allocation3], 4
      %s244 = int_to_ptr.vmem [resolvable:$true] %s243
      %246 = dma.vmem_to_hbm [thread:$0]  %s244, 32, %s3, [#allocation4]
    $region25: #{tpu_custom_call.1} parent=1 // pred_fallthru
      _
    // Predicated region
    $region26: #{tpu_custom_call.1} parent=1 // pred_check
      _
    $region27: #{tpu_custom_call.1} parent=1 // pred_check_branch
      %248 = sbr.rel (0) target = $region29
    $region28: #{tpu_custom_call.1} parent=1 // pred_region
      %249 = dma.done [#allocation4], 32
    $region29: #{tpu_custom_call.1} parent=1 // pred_fallthru
      _
    %250 = vsyncpa [#allocation4], 1

</llo_original>
